<compile_context>
chip_gen: v7x
topology: tpu7x:2x2x1
jax: 0.10.0
libtpu: 0.0.40
codegen_flags: <defaults>
</compile_context>

<pallas_src>
import functools

import jax
import jax.numpy as jnp
from jax.experimental import pallas as pl
from jax.experimental.pallas import tpu as pltpu

NEGATIVE_SLOPE = 0.1
BN_EPS = 1e-5
LANE = 128


def _round_up(v, m):
    return (v + m - 1) // m * m


def _stats_kernel(x_ref, w1_ref, s1_ref, s2_ref):
    """Pass 1: accumulate per-feature sum(h) and sum(h*h) over the full batch."""
    i = pl.program_id(0)

    @pl.when(i == 0)
    def _init():
        s1_ref[...] = jnp.zeros_like(s1_ref)
        s2_ref[...] = jnp.zeros_like(s2_ref)

    # Linear(input_dim -> emb, bias=False), bf16 operands, f32 accumulation.
    h = jnp.dot(x_ref[...], w1_ref[...], preferred_element_type=jnp.float32)  # [TB, E]
    s1_ref[...] += jnp.sum(h, axis=0, keepdims=True)
    s2_ref[...] += jnp.sum(h * h, axis=0, keepdims=True)


def _apply_kernel(x_ref, w1_ref, s1_ref, s2_ref, gamma_ref, beta_ref, w2_ref,
                  b2_ref, out_ref, *, inv_batch):
    """Pass 2: folded BN -> LeakyReLU -> emb->1 linear as VPU multiply + lane reduce."""
    h = jnp.dot(x_ref[...], w1_ref[...], preferred_element_type=jnp.float32)  # [TB, E]

    # BatchNorm1d training mode: batch mean + biased batch variance, folded into a
    # single per-feature scale/shift (2 VPU ops per element instead of ~5).
    mean = s1_ref[...] * inv_batch                                       # [1, E]
    var = jnp.maximum(s2_ref[...] * inv_batch - mean * mean, 0.0)        # [1, E]
    scale = gamma_ref[...] * jax.lax.rsqrt(var + BN_EPS)                 # [1, E]
    shift = beta_ref[...] - mean * scale                                 # [1, E]

    h_bn = h * scale + shift
    act = jnp.where(h_bn >= 0, h_bn, NEGATIVE_SLOPE * h_bn)

    # Linear(emb -> 1): broadcast multiply + lane reduction (keeps the MXU free and the
    # output lane-dense: one scalar per batch row, batch on the lane axis).
    logits = jnp.sum(act * w2_ref[...], axis=1) + b2_ref[0, 0]           # [TB]
    out_ref[...] = logits.astype(out_ref.dtype)


def discriminator_forward(x, w1_t, gamma, beta, w2, b2, *, tile_b=512):
    """Forward of the Discriminator module.

    x: [B, D] f32.  w1_t: [D, E] (= Linear1.weight.T).  gamma/beta: [E] (BatchNorm1d).
    w2: [E] (= Linear2.weight[0]).  b2: scalar (= Linear2.bias[0]).  Returns [B, 1] f32.
    """
    B, D = x.shape
    E = w1_t.shape[1]

    d_pad = _round_up(D, LANE)
    e_pad = _round_up(E, LANE)
    tile_b = _round_up(min(tile_b, B), LANE)     # lane-multiple batch tiles
    b_pad = _round_up(B, tile_b)
    nb = b_pad // tile_b

    # Zero padding never changes the math: zero x columns / w1 rows contribute 0 to the
    # matmul; padded emb columns get gamma/beta/w2 == 0; padded batch rows add 0 to the
    # BN sums (we divide by the true B) and are sliced away at the end.
    x_p = jnp.zeros((b_pad, d_pad), jnp.bfloat16).at[:B, :D].set(x.astype(jnp.bfloat16))
    w1_p = jnp.zeros((d_pad, e_pad), jnp.bfloat16).at[:D, :E].set(w1_t.astype(jnp.bfloat16))
    gamma_p = jnp.zeros((1, e_pad), jnp.float32).at[0, :E].set(gamma.reshape(-1).astype(jnp.float32))
    beta_p = jnp.zeros((1, e_pad), jnp.float32).at[0, :E].set(beta.reshape(-1).astype(jnp.float32))
    w2_p = jnp.zeros((1, e_pad), jnp.float32).at[0, :E].set(w2.reshape(-1).astype(jnp.float32))
    b2_p = jnp.asarray(b2, jnp.float32).reshape(1, 1)

    matmul_flops = 2 * b_pad * d_pad * e_pad
    x_bytes = b_pad * d_pad * 2
    w1_bytes = d_pad * e_pad * 2

    # ---- Pass 1: full-batch BN statistics (resident [1, E] accumulators). ----
    s1, s2 = pl.pallas_call(
        _stats_kernel,
        out_shape=(jax.ShapeDtypeStruct((1, e_pad), jnp.float32),
                   jax.ShapeDtypeStruct((1, e_pad), jnp.float32)),
        grid_spec=pltpu.PrefetchScalarGridSpec(
            num_scalar_prefetch=0,
            grid=(nb,),
            in_specs=[
                pl.BlockSpec((tile_b, d_pad), lambda i: (i, 0)),   # x tile (bf16)
                pl.BlockSpec((d_pad, e_pad), lambda i: (0, 0)),    # w1 resident
            ],
            out_specs=[
                pl.BlockSpec((1, e_pad), lambda i: (0, 0)),        # sum(h) accumulator
                pl.BlockSpec((1, e_pad), lambda i: (0, 0)),        # sum(h*h) accumulator
            ],
        ),
        compiler_params=pltpu.CompilerParams(
            dimension_semantics=("arbitrary",),          # accumulation across batch tiles
            vmem_limit_bytes=32 * 1024 * 1024),          # fits v7x's smaller VMEM
        cost_estimate=pl.CostEstimate(
            flops=matmul_flops, transcendentals=0,
            bytes_accessed=x_bytes + w1_bytes + 2 * e_pad * 4),
    )(x_p, w1_p)

    # ---- Pass 2: normalize + LeakyReLU + emb->1 linear, lane-dense 1-D output. ----
    kernel2 = functools.partial(_apply_kernel, inv_batch=1.0 / float(B))
    out_flat = pl.pallas_call(
        kernel2,
        out_shape=jax.ShapeDtypeStruct((b_pad,), jnp.float32),
        grid_spec=pltpu.PrefetchScalarGridSpec(
            num_scalar_prefetch=0,
            grid=(nb,),
            in_specs=[
                pl.BlockSpec((tile_b, d_pad), lambda i: (i, 0)),   # x tile (bf16)
                pl.BlockSpec((d_pad, e_pad), lambda i: (0, 0)),    # w1 resident
                pl.BlockSpec((1, e_pad), lambda i: (0, 0)),        # sum(h)
                pl.BlockSpec((1, e_pad), lambda i: (0, 0)),        # sum(h*h)
                pl.BlockSpec((1, e_pad), lambda i: (0, 0)),        # gamma
                pl.BlockSpec((1, e_pad), lambda i: (0, 0)),        # beta
                pl.BlockSpec((1, e_pad), lambda i: (0, 0)),        # w2 row
                pl.BlockSpec(memory_space=pltpu.MemorySpace.SMEM), # b2 scalar
            ],
            out_specs=pl.BlockSpec((tile_b,), lambda i: (i,)),     # lane-dense output
        ),
        compiler_params=pltpu.CompilerParams(
            dimension_semantics=("parallel",),           # independent tiles (v7x 2 TCs)
            vmem_limit_bytes=32 * 1024 * 1024),
        cost_estimate=pl.CostEstimate(
            flops=matmul_flops + 6 * b_pad * e_pad, transcendentals=nb * e_pad,
            bytes_accessed=x_bytes + w1_bytes + 5 * e_pad * 4 + b_pad * 4),
    )(x_p, w1_p, s1, s2, gamma_p, beta_p, w2_p, b2_p)

    return out_flat[:B].reshape(B, 1)


def reference_forward(x, w1_t, gamma, beta, w2, b2, *, mxu_bf16=False):
    """Pure-JAX reference of the PyTorch module (BatchNorm1d in training mode)."""
    if mxu_bf16:  # mirrors the kernel's bf16 MXU operands / f32 accumulation
        h = jnp.dot(x.astype(jnp.bfloat16), w1_t.astype(jnp.bfloat16),
                    preferred_element_type=jnp.float32)
    else:
        h = x @ w1_t
    mean = h.mean(axis=0, keepdims=True)
    var = ((h - mean) ** 2).mean(axis=0, keepdims=True)   # biased batch variance
    h_bn = (h - mean) / jnp.sqrt(var + BN_EPS) * gamma[None, :] + beta[None, :]
    act = jnp.where(h_bn >= 0, h_bn, NEGATIVE_SLOPE * h_bn)
    return act @ w2.reshape(-1, 1) + b2


if __name__ == "__main__":
    # Small shapes consistent with the module; deliberately non-128-aligned features.
    batch, input_dim, embedding_dim = 256, 100, 64

    key = jax.random.PRNGKey(0)
    k_x, k_w1, k_g, k_b, k_w2, k_b2 = jax.random.split(key, 6)

    x = jax.random.normal(k_x, (batch, input_dim), jnp.float32)
    w1_t = 0.1 * jax.random.normal(k_w1, (input_dim, embedding_dim), jnp.float32)  # Linear1.weight.T
    gamma = 1.0 + 0.01 * jax.random.normal(k_g, (embedding_dim,), jnp.float32)     # BN weight
    beta = 0.01 * jax.random.normal(k_b, (embedding_dim,), jnp.float32)            # BN bias
    w2 = 0.1 * jax.random.normal(k_w2, (embedding_dim,), jnp.float32)              # Linear2.weight[0]
    b2 = 0.01 * jax.random.normal(k_b2, (), jnp.float32)                           # Linear2.bias[0]

    # tile_b=128 -> 2 batch tiles, exercising the tiled BN-statistics accumulation.
    out = discriminator_forward(x, w1_t, gamma, beta, w2, b2, tile_b=128)
    jax.block_until_ready(out)
    assert out.shape == (batch, 1)

    # Tight check vs a reference that mirrors the kernel's bf16 MXU inputs.
    ref_mixed = reference_forward(x, w1_t, gamma, beta, w2, b2, mxu_bf16=True)
    err_mixed = float(jnp.max(jnp.abs(out - ref_mixed)))
    assert jnp.allclose(out, ref_mixed, atol=2e-3, rtol=2e-3), err_mixed

    # Loose check vs the full-f32 module semantics (difference = bf16 MXU rounding only).
    ref_f32 = reference_forward(x, w1_t, gamma, beta, w2, b2)
    err_f32 = float(jnp.max(jnp.abs(out - ref_f32)))
    assert jnp.allclose(out, ref_f32, atol=5e-2, rtol=5e-2), err_f32

    print("KERNEL_OK")
</pallas_src>

<mosaic_0001>
module attributes {stable_mosaic.version = 11 : i64} {
  func.func @_stats_kernel(%arg0: i32, %arg1: memref<128x128xbf16, #tpu.memory_space<vmem>>, %arg2: memref<128x128xbf16, #tpu.memory_space<vmem>>, %arg3: memref<1x128xf32, #tpu.memory_space<vmem>>, %arg4: memref<1x128xf32, #tpu.memory_space<vmem>>) attributes {dimension_semantics = [#tpu.dimension_semantics<arbitrary>], iteration_bounds = array<i64: 2>, scalar_prefetch = 0 : i64, scratch_operands = 0 : i64, tpu.core_type = #tpu.core_type<tc>, window_params = [{transform_indices = @transform_0, window_bounds = array<i64: 128, 128>}, {pipeline_mode = #tpu.pipeline_mode<synchronous>, transform_indices = @transform_1, window_bounds = array<i64: 128, 128>}, {pipeline_mode = #tpu.pipeline_mode<synchronous>, transform_indices = @transform_2, window_bounds = array<i64: 1, 128>}, {pipeline_mode = #tpu.pipeline_mode<synchronous>, transform_indices = @transform_3, window_bounds = array<i64: 1, 128>}]} {
    %c0_i32 = arith.constant 0 : i32
    %0 = arith.cmpi eq, %arg0, %c0_i32 : i32
    %1 = arith.extui %0 : i1 to i32
    %c0_i32_0 = arith.constant 0 : i32
    %2 = arith.cmpi ne, %1, %c0_i32_0 : i32
    scf.if %2 {
      %cst_14 = arith.constant 0.000000e+00 : f32
      %17 = vector.broadcast %cst_14 : f32 to vector<1x128xf32>
      %c0_15 = arith.constant 0 : index
      %c0_16 = arith.constant 0 : index
      %18 = vector.load %arg3[%c0_15, %c0_16] : memref<1x128xf32, #tpu.memory_space<vmem>>, vector<1x128xf32>
      tpu.vector_store %arg3[%c0_15, %c0_16], %17 {strides = array<i32>} : memref<1x128xf32, #tpu.memory_space<vmem>>, vector<1x128xf32>,
      %cst_17 = arith.constant 0.000000e+00 : f32
      %19 = vector.broadcast %cst_17 : f32 to vector<1x128xf32>
      %c0_18 = arith.constant 0 : index
      %c0_19 = arith.constant 0 : index
      %20 = vector.load %arg4[%c0_18, %c0_19] : memref<1x128xf32, #tpu.memory_space<vmem>>, vector<1x128xf32>
      tpu.vector_store %arg4[%c0_18, %c0_19], %19 {strides = array<i32>} : memref<1x128xf32, #tpu.memory_space<vmem>>, vector<1x128xf32>,
    } else {
    }
    %c0 = arith.constant 0 : index
    %c0_1 = arith.constant 0 : index
    %3 = vector.load %arg1[%c0, %c0_1] : memref<128x128xbf16, #tpu.memory_space<vmem>>, vector<128x128xbf16>
    %c0_2 = arith.constant 0 : index
    %c0_3 = arith.constant 0 : index
    %4 = vector.load %arg2[%c0_2, %c0_3] : memref<128x128xbf16, #tpu.memory_space<vmem>>, vector<128x128xbf16>
    %cst = arith.constant dense<0.000000e+00> : vector<128x128xf32>
    %5 = tpu.matmul %3, %4, %cst {dimension_numbers = #tpu.dot_dimension_numbers<[1], [0], [0], [1], [0, 0, 1, 1], [], []>} : vector<128x128xbf16>, vector<128x128xbf16>, vector<128x128xf32> -> vector<128x128xf32>
    %c0_4 = arith.constant 0 : index
    %c0_5 = arith.constant 0 : index
    %6 = vector.load %arg3[%c0_4, %c0_5] : memref<1x128xf32, #tpu.memory_space<vmem>>, vector<1x128xf32>
    %cst_6 = arith.constant dense<0.000000e+00> : vector<128xf32>
    %7 = vector.multi_reduction <add>, %5, %cst_6 [0] : vector<128x128xf32> to vector<128xf32>
    %8 = vector.shape_cast %7 : vector<128xf32> to vector<1x128xf32>
    %9 = arith.addf %6, %8 : vector<1x128xf32>
    %c0_7 = arith.constant 0 : index
    %c0_8 = arith.constant 0 : index
    %10 = vector.load %arg3[%c0_7, %c0_8] : memref<1x128xf32, #tpu.memory_space<vmem>>, vector<1x128xf32>
    tpu.vector_store %arg3[%c0_7, %c0_8], %9 {strides = array<i32>} : memref<1x128xf32, #tpu.memory_space<vmem>>, vector<1x128xf32>,
    %c0_9 = arith.constant 0 : index
    %c0_10 = arith.constant 0 : index
    %11 = vector.load %arg4[%c0_9, %c0_10] : memref<1x128xf32, #tpu.memory_space<vmem>>, vector<1x128xf32>
    %12 = arith.mulf %5, %5 : vector<128x128xf32>
    %cst_11 = arith.constant dense<0.000000e+00> : vector<128xf32>
    %13 = vector.multi_reduction <add>, %12, %cst_11 [0] : vector<128x128xf32> to vector<128xf32>
    %14 = vector.shape_cast %13 : vector<128xf32> to vector<1x128xf32>
    %15 = arith.addf %11, %14 : vector<1x128xf32>
    %c0_12 = arith.constant 0 : index
    %c0_13 = arith.constant 0 : index
    %16 = vector.load %arg4[%c0_12, %c0_13] : memref<1x128xf32, #tpu.memory_space<vmem>>, vector<1x128xf32>
    tpu.vector_store %arg4[%c0_12, %c0_13], %15 {strides = array<i32>} : memref<1x128xf32, #tpu.memory_space<vmem>>, vector<1x128xf32>,
    return
  }
  func.func @transform_0(%arg0: i32) -> (i32, i32) {
    %c0_i32 = arith.constant 0 : i32
    %c0_i32_0 = arith.constant 0 : i32
    return %arg0, %c0_i32 : i32, i32
  }
  func.func @transform_1(%arg0: i32) -> (i32, i32) {
    %c0_i32 = arith.constant 0 : i32
    %c0_i32_0 = arith.constant 0 : i32
    %c0_i32_1 = arith.constant 0 : i32
    return %c0_i32, %c0_i32_0 : i32, i32
  }
  func.func @transform_2(%arg0: i32) -> (i32, i32) {
    %c0_i32 = arith.constant 0 : i32
    %c0_i32_0 = arith.constant 0 : i32
    %c0_i32_1 = arith.constant 0 : i32
    return %c0_i32, %c0_i32_0 : i32, i32
  }
  func.func @transform_3(%arg0: i32) -> (i32, i32) {
    %c0_i32 = arith.constant 0 : i32
    %c0_i32_0 = arith.constant 0 : i32
    %c0_i32_1 = arith.constant 0 : i32
    return %c0_i32, %c0_i32_0 : i32, i32
  }
}

</mosaic_0001>

<llo_original>
// kernel: tpu_custom_call.1
$region0: #{tpu_custom_call.1}
  #allocation0 [shape = 'u32[]', space=smem, size = 0x4, offset = 0x4, fixed_abs, tag = 'smem constant byte address 0x4 - core index']
  #allocation1 [shape = 'u32[144,128]{1,0:T(1,128)}', space=vmem, size = 0x12000, scoped, tag = 'internal scratch']
  %s0 = inlined_call_operand.hbm [shape: bf16[256,128], index: 0, kind: input, shape index: {}]
  %s1 = inlined_call_operand.hbm [shape: bf16[128,128], index: 1, kind: input, shape index: {}]
  %s2 = inlined_call_operand.hbm [shape: f32[1,128], index: 2, kind: output, shape index: {0}]
  %s3 = inlined_call_operand.hbm [shape: f32[1,128], index: 3, kind: output, shape index: {1}]
  %4 = xla_tuple %s2, %s3
  %s5 = sld [smem:[#allocation0]]
  $region61: #{tpu_custom_call.1} parent=0
    _
  %s7 = ssub.s32 1, %s5
  %s8 = scalar_select 0, %s7, %s5
  $region1: #{tpu_custom_call.1} parent=0
    #allocation2 [shape = 'u8[65536]{0}', space=vmem, size = 0x10000, scoped, tag = 'input window, operand 0']
    #allocation3 [shape = 's32[2]{0}', space=sflag, size = 0x8, scoped, tag = 'scoped memory for tpu_custom_call.1']
    #allocation4 [shape = 's32[2]{0}', space=sflag, size = 0x8, scoped, tag = 'scoped memory for tpu_custom_call.1']
    #allocation5 [shape = 'u8[32768]{0}', space=vmem, size = 0x8000, scoped, tag = 'input window, operand 1, single buffered']
    #allocation6 [shape = 's32[1]{0}', space=sflag, size = 0x4, scoped, tag = 'scoped memory for tpu_custom_call.1']
    #allocation7 [shape = 'u8[512]{0}', space=vmem, size = 0x400, scoped, tag = 'output window, operand 0, single buffered']
    #allocation8 [shape = 'u8[512]{0}', space=vmem, size = 0x400, scoped, tag = 'output window, operand 1, single buffered']
    #allocation9 [shape = 's32[1]{0}', space=sflag, size = 0x4, scoped, tag = 'scoped memory for tpu_custom_call.1']
    %9 = vsyncpa [#allocation3], 0
    %s10 = scalar_lea.sflag [#allocation3], 1
    %11 = vsyncpa %s10, 0
    %12 = vsyncpa [#allocation6], 0
    %13 = vsyncpa [#allocation4], 0
    %14 = vsyncpa [#allocation9], 0
    loop: start=0, step=1, limit=4
    $region2: #{tpu_custom_call.1} parent=1 // loop_pre_header
      _
    $region3: #{tpu_custom_call.1} parent=1 // loop_header
      %s16 = sphi 0, %s20
      %p17 = scmp.ge.s32.totalorder %s16, 4
      %s26 = sphi 0, %s28
      %s29 = sphi 0, %s26
      %s30 = sphi 0, %s29
      %s46 = sphi 0, %s30
      %s50 = sphi 0, %s50
      %s52 = sphi 0, %s50
      %s53 = sphi 0, %s52
      %s67 = sphi 0, %s53
      %s71 = sphi 0, %s71
      %s73 = sphi 0, %s71
      %s74 = sphi 0, %s73
      %s88 = sphi 0, %s74
      %s92 = sphi 0, %s92
      %s94 = sphi 0, %s92
      %s95 = sphi 0, %s94
      %s109 = sphi 0, %s95
    $region4: #{tpu_custom_call.1} parent=1 // loop_header_branch
      %19 = sbr.rel (%p17) target = $region8
    $region5: #{tpu_custom_call.1} parent=1 // loop_body
      %s21 = ssub.s32 %s16, 1
      %s22 = ssub.s32 %s16, 2
      %s23 = sadd.s32 %s16, 1
      %s24 = ssub.s32 %s16, %s23
      %p25 = scmp.eq.s32.totalorder %s24, 0
      %s27 = sadd.s32 %s26, 1
      %s28 = scalar_select %p25, %s26, %s27
      %p31 = pneg %p25
      %p32 = scmp.eq.s32.totalorder %s16, 1
      %p33 = por %p31, %p32
      %p34 = scmp.ne.s32.totalorder %s26, %s29
      %p35 = scmp.eq.s32.totalorder %s16, 0
      %p36 = por %p34, %p35
      %p37 = scmp.ne.s32.totalorder %s26, %s29
      %p38 = scmp.eq.s32.totalorder %s21, 1
      %p39 = por %p37, %p38
      %p40 = scmp.ne.s32.totalorder %s29, %s30
      %p41 = scmp.eq.s32.totalorder %s21, 0
      %p42 = por %p40, %p41
      %p43 = scmp.ne.s32.totalorder %s29, %s30
      %p44 = scmp.eq.s32.totalorder %s22, 1
      %p45 = por %p43, %p44
      %p47 = scmp.ne.s32.totalorder %s30, %s46
      %p48 = scmp.eq.s32.totalorder %s22, 0
      %p49 = por %p47, %p48
      %s51 = sadd.s32 %s50, 1
      %p54 = scmp.eq.s32.totalorder %s16, 1
      %p55 = scmp.ne.s32.totalorder %s50, %s52
      %p56 = scmp.eq.s32.totalorder %s16, 0
      %p57 = por %p55, %p56
      %p58 = scmp.ne.s32.totalorder %s50, %s52
      %p59 = scmp.eq.s32.totalorder %s21, 1
      %p60 = por %p58, %p59
      %p61 = scmp.ne.s32.totalorder %s52, %s53
      %p62 = scmp.eq.s32.totalorder %s21, 0
      %p63 = por %p61, %p62
      %p64 = scmp.ne.s32.totalorder %s52, %s53
      %p65 = scmp.eq.s32.totalorder %s22, 1
      %p66 = por %p64, %p65
      %p68 = scmp.ne.s32.totalorder %s53, %s67
      %p69 = scmp.eq.s32.totalorder %s22, 0
      %p70 = por %p68, %p69
      %s72 = sadd.s32 %s71, 1
      %p75 = scmp.eq.s32.totalorder %s16, 1
      %p76 = scmp.ne.s32.totalorder %s71, %s73
      %p77 = scmp.eq.s32.totalorder %s16, 0
      %p78 = por %p76, %p77
      %p79 = scmp.ne.s32.totalorder %s71, %s73
      %p80 = scmp.eq.s32.totalorder %s21, 1
      %p81 = por %p79, %p80
      %p82 = scmp.ne.s32.totalorder %s73, %s74
      %p83 = scmp.eq.s32.totalorder %s21, 0
      %p84 = por %p82, %p83
      %p85 = scmp.ne.s32.totalorder %s73, %s74
      %p86 = scmp.eq.s32.totalorder %s22, 1
      %p87 = por %p85, %p86
      %p89 = scmp.ne.s32.totalorder %s74, %s88
      %p90 = scmp.eq.s32.totalorder %s22, 0
      %p91 = por %p89, %p90
      %s93 = sadd.s32 %s92, 1
      %p96 = scmp.eq.s32.totalorder %s16, 1
      %p97 = scmp.ne.s32.totalorder %s92, %s94
      %p98 = scmp.eq.s32.totalorder %s16, 0
      %p99 = por %p97, %p98
      %p100 = scmp.ne.s32.totalorder %s92, %s94
      %p101 = scmp.eq.s32.totalorder %s21, 1
      %p102 = por %p100, %p101
      %p103 = scmp.ne.s32.totalorder %s94, %s95
      %p104 = scmp.eq.s32.totalorder %s21, 0
      %p105 = por %p103, %p104
      %p106 = scmp.ne.s32.totalorder %s94, %s95
      %p107 = scmp.eq.s32.totalorder %s22, 1
      %p108 = por %p106, %p107
      %p110 = scmp.ne.s32.totalorder %s95, %s109
      %p111 = scmp.eq.s32.totalorder %s22, 0
      %p112 = por %p110, %p111
      %p113 = scmp.le.s32.totalorder 1, %s16
      %p114 = scmp.lt.s32.totalorder %s16, 3
      %p115 = pnand %p113, %p114
      %p116 = pneg %p115
      // Predicated region
      $region9: #{tpu_custom_call.1} parent=5 // pred_check
        _
      $region10: #{tpu_custom_call.1} parent=5 // pred_check_branch
        %118 = sbr.rel (%p115) target = $region12
      $region11: #{tpu_custom_call.1} parent=5 // pred_region
        %s119 = ssub.s32 %s16, 1
        // Predicated region
        $region13: #{tpu_custom_call.1} parent=11 // pred_check
          %p120 = pneg %p63
        $region14: #{tpu_custom_call.1} parent=11 // pred_check_branch
          %122 = sbr.rel (%p120) target = $region16
        $region15: #{tpu_custom_call.1} parent=11 // pred_region
          %s124 = ssub.s32 1024, 1024
          %125 = vsyncadd [#allocation6], %s124
          %s126 = sshll.u32 [#allocation5], 4
          %s127 = int_to_ptr.vmem [resolvable:$true] %s126
          %132 = dma.hbm_to_vmem [thread:$0]  %s1, 1024, %s127, [#allocation6], 64, 64, 4
        $region16: #{tpu_custom_call.1} parent=11 // pred_fallthru
          _
      $region12: #{tpu_custom_call.1} parent=5 // pred_fallthru
        _
      %p133 = scmp.lt.s32.totalorder %s16, 2
      // Predicated region
      $region17: #{tpu_custom_call.1} parent=5 // pred_check
        %p134 = pneg %p133
      $region18: #{tpu_custom_call.1} parent=5 // pred_check_branch
        %136 = sbr.rel (%p134) target = $region20
      $region19: #{tpu_custom_call.1} parent=5 // pred_region
        // Predicated region
        $region21: #{tpu_custom_call.1} parent=19 // pred_check
          %p137 = pneg %p36
        $region22: #{tpu_custom_call.1} parent=19 // pred_check_branch
          %139 = sbr.rel (%p137) target = $region24
        $region23: #{tpu_custom_call.1} parent=19 // pred_region
          %s140 = sand.u32 %s26, 1
          %s141 = scalar_lea.sflag [#allocation3], %s140
          %s142 = sand.u32 %s26, 1
          %s143 = smul.addr %s142, 64
          %s144 = scalar_lea.vmem [#allocation2], %s143
          %s145 = smul.u32 16, %s16
          %s147 = ssub.s32 1024, 1024
          %148 = vsyncadd %s141, %s147
          %s149 = smul.addr %s145, 64
          %s150 = scalar_lea.hbm %s0, %s149
          %s151 = sshll.u32 %s144, 4
          %s152 = int_to_ptr.vmem [resolvable:$true] %s151
          %157 = dma.hbm_to_vmem [thread:$0]  %s150, 1024, %s152, %s141, 64, 64, 4
        $region24: #{tpu_custom_call.1} parent=19 // pred_fallthru
          _
      $region20: #{tpu_custom_call.1} parent=5 // pred_fallthru
        _
      %p158 = scmp.le.s32.totalorder 1, %s16
      %p159 = scmp.lt.s32.totalorder %s16, 3
      %p160 = pnand %p158, %p159
      %p161 = pneg %p160
      // Predicated region
      $region25: #{tpu_custom_call.1} parent=5 // pred_check
        _
      $region26: #{tpu_custom_call.1} parent=5 // pred_check_branch
        %163 = sbr.rel (%p160) target = $region28
      $region27: #{tpu_custom_call.1} parent=5 // pred_region
        %s164 = ssub.s32 %s16, 1
        %s165 = sand.u32 %s29, 1
        %s166 = scalar_lea.sflag [#allocation3], %s165
        %s167 = sand.u32 %s29, 1
        %s168 = smul.addr %s167, 64
        %s169 = scalar_lea.vmem [#allocation2], %s168
        // Predicated region
        $region29: #{tpu_custom_call.1} parent=27 // pred_check
          %p170 = pneg %p42
        $region30: #{tpu_custom_call.1} parent=27 // pred_check_branch
          %172 = sbr.rel (%p170) target = $region32
        $region31: #{tpu_custom_call.1} parent=27 // pred_region
          %173 = dma.done %s166, 1024
        $region32: #{tpu_custom_call.1} parent=27 // pred_fallthru
          _
        // Predicated region
        $region33: #{tpu_custom_call.1} parent=27 // pred_check
          %p174 = pneg %p63
        $region34: #{tpu_custom_call.1} parent=27 // pred_check_branch
          %176 = sbr.rel (%p174) target = $region36
        $region35: #{tpu_custom_call.1} parent=27 // pred_region
          %177 = dma.done [#allocation6], 1024
        $region36: #{tpu_custom_call.1} parent=27 // pred_fallthru
          _
        %s178 = sand.u32 %s29, 1
        %s179 = scalar_lea.sflag [#allocation3], %s178
        %s180 = sand.u32 %s29, 1
        %s181 = smul.addr %s180, 64
        %s182 = scalar_lea.vmem [#allocation2], %s181
        %p183 = pneg %p42
        %p184 = pneg %p39
        %p185 = pneg %p63
        %p186 = pneg %p60
        %p187 = pneg %p84
        %p188 = pneg %p81
        %p189 = pneg %p105
        %p190 = pneg %p102
        %s191 = smul.u32 16, %s21
        %p193 = scmp.eq.s32.totalorder %s21, 0
        // Predicated region
        $region37: #{tpu_custom_call.1} parent=27 // pred_check
          %p194 = pneg %p193
        $region38: #{tpu_custom_call.1} parent=27 // pred_check_branch
          %196 = sbr.rel (%p194) target = $region40
        $region39: #{tpu_custom_call.1} parent=27 // pred_region
          %197 = vst [vmem:[#allocation7] sm:$0x1] 0.0
          %198 = vst [vmem:[#allocation8] sm:$0x1] 0.0
        $region40: #{tpu_custom_call.1} parent=27 // pred_fallthru
          _
        %v199 = vld [vmem:[%s169] sm:$0xf]
        %v200 = vld [vmem:[%s169 + $0x4] sm:$0xf]
        %v201 = vld [vmem:[%s169 + $0x8] sm:$0xf]
        %v202 = vld [vmem:[%s169 + $0xc] sm:$0xf]
        %v203 = vld [vmem:[%s169 + $0x10] sm:$0xf]
        %v204 = vld [vmem:[%s169 + $0x14] sm:$0xf]
        %v205 = vld [vmem:[%s169 + $0x18] sm:$0xf]
        %v206 = vld [vmem:[%s169 + $0x1c] sm:$0xf]
        %v207 = vld [vmem:[%s169 + $0x20] sm:$0xf]
        %v208 = vld [vmem:[%s169 + $0x24] sm:$0xf]
        %v209 = vld [vmem:[%s169 + $0x28] sm:$0xf]
        %v210 = vld [vmem:[%s169 + $0x2c] sm:$0xf]
        %v211 = vld [vmem:[%s169 + $0x30] sm:$0xf]
        %v212 = vld [vmem:[%s169 + $0x34] sm:$0xf]
        %v213 = vld [vmem:[%s169 + $0x38] sm:$0xf]
        %v214 = vld [vmem:[%s169 + $0x3c] sm:$0xf]
        %v215 = vld [vmem:[#allocation5] sm:$0xf]
        %v216 = vld [vmem:[#allocation5 + $0x4] sm:$0xf]
        %v217 = vld [vmem:[#allocation5 + $0x8] sm:$0xf]
        %v218 = vld [vmem:[#allocation5 + $0xc] sm:$0xf]
        %v219 = vld [vmem:[#allocation5 + $0x10] sm:$0xf]
        %v220 = vld [vmem:[#allocation5 + $0x14] sm:$0xf]
        %v221 = vld [vmem:[#allocation5 + $0x18] sm:$0xf]
        %v222 = vld [vmem:[#allocation5 + $0x1c] sm:$0xf]
        %v223 = vld [vmem:[#allocation5 + $0x20] sm:$0xf]
        %v224 = vld [vmem:[#allocation5 + $0x24] sm:$0xf]
        %v225 = vld [vmem:[#allocation5 + $0x28] sm:$0xf]
        %v226 = vld [vmem:[#allocation5 + $0x2c] sm:$0xf]
        %v227 = vld [vmem:[#allocation5 + $0x30] sm:$0xf]
        %v228 = vld [vmem:[#allocation5 + $0x34] sm:$0xf]
        %v229 = vld [vmem:[#allocation5 + $0x38] sm:$0xf]
        %v230 = vld [vmem:[#allocation5 + $0x3c] sm:$0xf]
        %v247 = vunpack.c.l.b16 %v199
        %v248 = vunpack.c.l.b16 %v200
        %v249 = vunpack.c.l.b16 %v201
        %v250 = vunpack.c.l.b16 %v202
        %v251 = vunpack.c.l.b16 %v203
        %v252 = vunpack.c.l.b16 %v204
        %v253 = vunpack.c.l.b16 %v205
        %v254 = vunpack.c.l.b16 %v206
        %v255 = vunpack.c.l.b16 %v207
        %v256 = vunpack.c.l.b16 %v208
        %v257 = vunpack.c.l.b16 %v209
        %v258 = vunpack.c.l.b16 %v210
        %v259 = vunpack.c.l.b16 %v211
        %v260 = vunpack.c.l.b16 %v212
        %v261 = vunpack.c.l.b16 %v213
        %v262 = vunpack.c.l.b16 %v214
        %v263 = vpack.c.b16 %v248, %v247
        %v264 = vpack.c.b16 %v250, %v249
        %v265 = vpack.c.b16 %v252, %v251
        %v266 = vpack.c.b16 %v254, %v253
        %v267 = vpack.c.b16 %v256, %v255
        %v268 = vpack.c.b16 %v258, %v257
        %v269 = vpack.c.b16 %v260, %v259
        %v270 = vpack.c.b16 %v262, %v261
        %v295 = vunpack.c.l.b16 %v215
        %v296 = vunpack.c.l.b16 %v216
        %v297 = vunpack.c.l.b16 %v217
        %v298 = vunpack.c.l.b16 %v218
        %v299 = vunpack.c.l.b16 %v219
        %v300 = vunpack.c.l.b16 %v220
        %v301 = vunpack.c.l.b16 %v221
        %v302 = vunpack.c.l.b16 %v222
        %v303 = vunpack.c.l.b16 %v223
        %v304 = vunpack.c.l.b16 %v224
        %v305 = vunpack.c.l.b16 %v225
        %v306 = vunpack.c.l.b16 %v226
        %v307 = vunpack.c.l.b16 %v227
        %v308 = vunpack.c.l.b16 %v228
        %v309 = vunpack.c.l.b16 %v229
        %v310 = vunpack.c.l.b16 %v230
        %v311 = vpack.c.b16 %v296, %v295
        %v312 = vpack.c.b16 %v298, %v297
        %v313 = vpack.c.b16 %v300, %v299
        %v314 = vpack.c.b16 %v302, %v301
        %v315 = vpack.c.b16 %v304, %v303
        %v316 = vpack.c.b16 %v306, %v305
        %v317 = vpack.c.b16 %v308, %v307
        %v318 = vpack.c.b16 %v310, %v309
        %327 = vmatprep.subr.bf16.mxu0 0
        %328 = vmatpush1.bf16.msra.mxu0 %v311
        %329 = vmatprep.subr.bf16.mxu0 0
        %330 = vmatpush1.bf16.msra.mxu0 %v312
        %331 = vmatprep.subr.bf16.mxu0 0
        %332 = vmatpush1.bf16.msra.mxu0 %v313
        %333 = vmatprep.subr.bf16.mxu0 0
        %334 = vmatpush1.bf16.msra.mxu0 %v314
        %335 = vmatprep.subr.bf16.mxu0 0
        %336 = vmatpush1.bf16.msra.mxu0 %v315
        %337 = vmatprep.subr.bf16.mxu0 0
        %338 = vmatpush1.bf16.msra.mxu0 %v316
        %339 = vmatprep.subr.bf16.mxu0 0
        %340 = vmatpush1.bf16.msra.mxu0 %v317
        %341 = vmatprep.subr.bf16.mxu0 0
        %342 = vmatpush1.bf16.msra.mxu0 %v318
        %343 = vmatprep.subr.bf16.mxu0 0
        %344 = vmatpush1.bf16.msra.mxu0 0
        %345 = vmatprep.subr.bf16.mxu0 0
        %346 = vmatpush1.bf16.msra.mxu0 0
        %347 = vmatprep.subr.bf16.mxu0 0
        %348 = vmatpush1.bf16.msra.mxu0 0
        %349 = vmatprep.subr.bf16.mxu0 0
        %350 = vmatpush1.bf16.msra.mxu0 0
        %351 = vmatprep.subr.bf16.mxu0 0
        %352 = vmatpush1.bf16.msra.mxu0 0
        %353 = vmatprep.subr.bf16.mxu0 0
        %354 = vmatpush1.bf16.msra.mxu0 0
        %355 = vmatprep.subr.bf16.mxu0 0
        %356 = vmatpush1.bf16.msra.mxu0 0
        %357 = vmatprep.subr.bf16.mxu0 0
        %358 = vmatpush1.bf16.msra.mxu0 0
        %359 = vmatprep.mubr.bf16.mxu0 0
        %360 = vmatmul.mubr.bf16.gmra.mrb[0].mxu0 %v263
        %v361 = vpop.f32.mrb[0].mxu0
        %v362 = vadd.f32 0.0, %v361
        %v363 = vpop.f32.mrb[0].mxu0
        %v364 = vpop.f32.mrb[0].mxu0
        %v365 = vadd.f32 0.0, %v364
        %v366 = vpop.f32.mrb[0].mxu0
        %367 = vmatprep.mubr.bf16.mxu0 0
        %368 = vmatmul.mubr.bf16.gmra.mrb[0].mxu0 %v264
        %v369 = vpop.f32.mrb[0].mxu0
        %v370 = vadd.f32 0.0, %v369
        %v371 = vpop.f32.mrb[0].mxu0
        %v372 = vpop.f32.mrb[0].mxu0
        %v373 = vadd.f32 0.0, %v372
        %v374 = vpop.f32.mrb[0].mxu0
        %375 = vmatprep.mubr.bf16.mxu0 0
        %376 = vmatmul.mubr.bf16.gmra.mrb[0].mxu0 %v265
        %v377 = vpop.f32.mrb[0].mxu0
        %v378 = vadd.f32 0.0, %v377
        %v379 = vpop.f32.mrb[0].mxu0
        %v380 = vpop.f32.mrb[0].mxu0
        %v381 = vadd.f32 0.0, %v380
        %v382 = vpop.f32.mrb[0].mxu0
        %383 = vmatprep.mubr.bf16.mxu0 0
        %384 = vmatmul.mubr.bf16.gmra.mrb[0].mxu0 %v266
        %v385 = vpop.f32.mrb[0].mxu0
        %v386 = vadd.f32 0.0, %v385
        %v387 = vpop.f32.mrb[0].mxu0
        %v388 = vpop.f32.mrb[0].mxu0
        %v389 = vadd.f32 0.0, %v388
        %v390 = vpop.f32.mrb[0].mxu0
        %391 = vmatprep.mubr.bf16.mxu0 0
        %392 = vmatmul.mubr.bf16.gmra.mrb[0].mxu0 %v267
        %v393 = vpop.f32.mrb[0].mxu0
        %v394 = vadd.f32 0.0, %v393
        %v395 = vpop.f32.mrb[0].mxu0
        %v396 = vpop.f32.mrb[0].mxu0
        %v397 = vadd.f32 0.0, %v396
        %v398 = vpop.f32.mrb[0].mxu0
        %399 = vmatprep.mubr.bf16.mxu0 0
        %400 = vmatmul.mubr.bf16.gmra.mrb[0].mxu0 %v268
        %v401 = vpop.f32.mrb[0].mxu0
        %v402 = vadd.f32 0.0, %v401
        %v403 = vpop.f32.mrb[0].mxu0
        %v404 = vpop.f32.mrb[0].mxu0
        %v405 = vadd.f32 0.0, %v404
        %v406 = vpop.f32.mrb[0].mxu0
        %407 = vmatprep.mubr.bf16.mxu0 0
        %408 = vmatmul.mubr.bf16.gmra.mrb[0].mxu0 %v269
        %v409 = vpop.f32.mrb[0].mxu0
        %v410 = vadd.f32 0.0, %v409
        %v411 = vpop.f32.mrb[0].mxu0
        %v412 = vpop.f32.mrb[0].mxu0
        %v413 = vadd.f32 0.0, %v412
        %v414 = vpop.f32.mrb[0].mxu0
        %415 = vmatprep.mubr.bf16.mxu0 0
        %416 = vmatmul.mubr.bf16.gmra.mrb[0].mxu0 %v270
        %v417 = vpop.f32.mrb[0].mxu0
        %v418 = vadd.f32 0.0, %v417
        %v419 = vpop.f32.mrb[0].mxu0
        %v420 = vpop.f32.mrb[0].mxu0
        %v421 = vadd.f32 0.0, %v420
        %v422 = vpop.f32.mrb[0].mxu0
        %423 = vdwg.mxu0
        %v424 = vld [vmem:[#allocation7] sm:$0x1]
        %v425 = vadd.f32 %v362, %v365
        %v426 = vadd.f32 %v425, %v370
        %v427 = vadd.f32 %v426, %v373
        %v428 = vadd.f32 %v427, %v378
        %v429 = vadd.f32 %v428, %v381
        %v430 = vadd.f32 %v429, %v386
        %v431 = vadd.f32 %v430, %v389
        %v432 = vadd.f32 %v431, %v394
        %v433 = vadd.f32 %v432, %v397
        %v434 = vadd.f32 %v433, %v402
        %v435 = vadd.f32 %v434, %v405
        %v436 = vadd.f32 %v435, %v410
        %v437 = vadd.f32 %v436, %v413
        %v438 = vadd.f32 %v437, %v418
        %v439 = vadd.f32 %v438, %v421
        %v440 = vrot.slane %v439, 4
        %v441 = vadd.f32 %v439, %v440
        %v442 = vrot.slane %v441, 2
        %v443 = vadd.f32 %v441, %v442
        %v444 = vrot.slane %v443, 1
        %v445 = vadd.f32 %v443, %v444
        %v446 = vadd.f32 %v424, %v445
        %447 = vst [vmem:[#allocation7] sm:$0x1] %v446
        %v448 = vld [vmem:[#allocation8] sm:$0x1]
        %v449 = vmul.f32 %v362, %v362
        %v450 = vmul.f32 %v365, %v365
        %v451 = vmul.f32 %v370, %v370
        %v452 = vmul.f32 %v373, %v373
        %v453 = vmul.f32 %v378, %v378
        %v454 = vmul.f32 %v381, %v381
        %v455 = vmul.f32 %v386, %v386
        %v456 = vmul.f32 %v389, %v389
        %v457 = vmul.f32 %v394, %v394
        %v458 = vmul.f32 %v397, %v397
        %v459 = vmul.f32 %v402, %v402
        %v460 = vmul.f32 %v405, %v405
        %v461 = vmul.f32 %v410, %v410
        %v462 = vmul.f32 %v413, %v413
        %v463 = vmul.f32 %v418, %v418
        %v464 = vmul.f32 %v421, %v421
        %v465 = vadd.f32 %v449, %v450
        %v466 = vadd.f32 %v465, %v451
        %v467 = vadd.f32 %v466, %v452
        %v468 = vadd.f32 %v467, %v453
        %v469 = vadd.f32 %v468, %v454
        %v470 = vadd.f32 %v469, %v455
        %v471 = vadd.f32 %v470, %v456
        %v472 = vadd.f32 %v471, %v457
        %v473 = vadd.f32 %v472, %v458
        %v474 = vadd.f32 %v473, %v459
        %v475 = vadd.f32 %v474, %v460
        %v476 = vadd.f32 %v475, %v461
        %v477 = vadd.f32 %v476, %v462
        %v478 = vadd.f32 %v477, %v463
        %v479 = vadd.f32 %v478, %v464
        %v480 = vrot.slane %v479, 4
        %v481 = vadd.f32 %v479, %v480
        %v482 = vrot.slane %v481, 2
        %v483 = vadd.f32 %v481, %v482
        %v484 = vrot.slane %v483, 1
        %v485 = vadd.f32 %v483, %v484
        %v486 = vadd.f32 %v448, %v485
        %487 = vst [vmem:[#allocation8] sm:$0x1] %v486
        // Predicated region
        $region41: #{tpu_custom_call.1} parent=27 // pred_check
          %p488 = pneg %p81
        $region42: #{tpu_custom_call.1} parent=27 // pred_check_branch
          %490 = sbr.rel (%p488) target = $region44
        $region43: #{tpu_custom_call.1} parent=27 // pred_region
          %s492 = ssub.s32 16, 16
          %493 = vsyncadd [#allocation4], %s492
          %s495 = sshll.u32 [#allocation7], 4
          %s496 = int_to_ptr.vmem [resolvable:$true] %s495
          %498 = dma.vmem_to_hbm [thread:$0]  %s496, 16, %s2, [#allocation4]
        $region44: #{tpu_custom_call.1} parent=27 // pred_fallthru
          _
        // Predicated region
        $region45: #{tpu_custom_call.1} parent=27 // pred_check
          %p499 = pneg %p102
        $region46: #{tpu_custom_call.1} parent=27 // pred_check_branch
          %501 = sbr.rel (%p499) target = $region48
        $region47: #{tpu_custom_call.1} parent=27 // pred_region
          %s503 = ssub.s32 16, 16
          %504 = vsyncadd [#allocation9], %s503
          %s506 = sshll.u32 [#allocation8], 4
          %s507 = int_to_ptr.vmem [resolvable:$true] %s506
          %509 = dma.vmem_to_hbm [thread:$0]  %s507, 16, %s3, [#allocation9]
        $region48: #{tpu_custom_call.1} parent=27 // pred_fallthru
          _
        // Predicated region
        $region49: #{tpu_custom_call.1} parent=27 // pred_check
          %p510 = pneg %p81
        $region50: #{tpu_custom_call.1} parent=27 // pred_check_branch
          %512 = sbr.rel (%p510) target = $region52
        $region51: #{tpu_custom_call.1} parent=27 // pred_region
          %513 = dma.done [#allocation4], 16
        $region52: #{tpu_custom_call.1} parent=27 // pred_fallthru
          _
        // Predicated region
        $region53: #{tpu_custom_call.1} parent=27 // pred_check
          %p514 = pneg %p102
        $region54: #{tpu_custom_call.1} parent=27 // pred_check_branch
          %516 = sbr.rel (%p514) target = $region56
        $region55: #{tpu_custom_call.1} parent=27 // pred_region
          %517 = dma.done [#allocation9], 16
        $region56: #{tpu_custom_call.1} parent=27 // pred_fallthru
          _
      $region28: #{tpu_custom_call.1} parent=5 // pred_fallthru
        _
      %p518 = scmp.le.s32.totalorder 2, %s16
      // Predicated region
      $region57: #{tpu_custom_call.1} parent=5 // pred_check
        %p519 = pneg %p518
      $region58: #{tpu_custom_call.1} parent=5 // pred_check_branch
        %521 = sbr.rel (%p519) target = $region60
      $region59: #{tpu_custom_call.1} parent=5 // pred_region
        %s522 = ssub.s32 %s16, 2
      $region60: #{tpu_custom_call.1} parent=5 // pred_fallthru
        _
    $region6: #{tpu_custom_call.1} parent=1 // loop_footer
      %s20 = sadd.s32 1, %s16
    $region7: #{tpu_custom_call.1} parent=1 // loop_footer_branch
      %15 = sbr.rel target = $region3
    $region8: #{tpu_custom_call.1} parent=1 // loop_exit
      _
    %523 = vsyncpa [#allocation3], 1
    %s524 = scalar_lea.sflag [#allocation3], 1
    %525 = vsyncpa %s524, 1
    %526 = vsyncpa [#allocation6], 1
    %527 = vsyncpa [#allocation4], 1
    %s528 = scalar_lea.sflag [#allocation4], 1
    %529 = vsyncpa %s528, 1
    %530 = vsyncpa [#allocation9], 1

</llo_original>
